<compile_context>
chip_gen: v5e
topology: v5e:2x2
jax: 0.10.0
libtpu: 0.0.40
codegen_flags: <defaults>
</compile_context>

<pallas_src>
import functools

import jax
import jax.numpy as jnp
from jax.experimental import pallas as pl
from jax.experimental.pallas import tpu as pltpu

LANE = 128
TARGET_BLOCK_BYTES = 2 * 1024 * 1024  # ~2 MiB per buffer


def _sublane_for_dtype(dtype) -> int:
    """Minimum sublane granularity for packed vreg layout."""
    itemsize = jnp.dtype(dtype).itemsize
    if itemsize >= 4:
        return 8
    if itemsize == 2:
        return 16
    return 32


def _scale_kernel(x_ref, o_ref, *, scale):
    # x_ref / o_ref: (block_rows, 128) VMEM tiles. scale is a compile-time
    # Python float; weak typing keeps the multiply in x's dtype for floats.
    o_ref[...] = (x_ref[...] * scale).astype(o_ref.dtype)


def spect_scaling(x, scale):
    """Computes x * scale (forward of SpectScaling) with a Pallas kernel.

    x: any-shaped floating-point array (e.g. NCHW spectrogram batch).
    scale: Python float (the module's __init__ parameter).
    """
    orig_shape = x.shape
    dtype = x.dtype
    n_elem = x.size

    sublane = _sublane_for_dtype(dtype)
    tile_elems = sublane * LANE

    flat = x.reshape(-1)
    pad = (-n_elem) % tile_elems
    if pad:
        # Single pad op (only for awkward sizes); typical NCHW shapes hit the
        # free fast path above.
        flat = jnp.pad(flat, (0, pad))
    rows = flat.size // LANE
    x2d = flat.reshape(rows, LANE)

    # Block sized for ~2 MiB per buffer, rounded to the sublane granularity,
    # capped at the full row extent.
    itemsize = jnp.dtype(dtype).itemsize
    block_rows = max(sublane, TARGET_BLOCK_BYTES // (LANE * itemsize))
    block_rows = (block_rows // sublane) * sublane
    block_rows = min(block_rows, rows)

    grid = (pl.cdiv(rows, block_rows),)

    kernel = functools.partial(_scale_kernel, scale=float(scale))

    out2d = pl.pallas_call(
        kernel,
        out_shape=jax.ShapeDtypeStruct((rows, LANE), dtype),
        grid=grid,
        in_specs=[pl.BlockSpec((block_rows, LANE), lambda i: (i, 0))],
        out_specs=pl.BlockSpec((block_rows, LANE), lambda i: (i, 0)),
        compiler_params=pltpu.CompilerParams(
            dimension_semantics=("parallel",)
        ),
    )(x2d)

    if pad:
        return out2d.reshape(-1)[:n_elem].reshape(orig_shape)
    return out2d.reshape(orig_shape)


if __name__ == "__main__":
    key = jax.random.PRNGKey(0)
    # NCHW spectrogram-like input, matching PyTorch conv convention
    x = jax.random.normal(key, (2, 4, 16, 16), dtype=jnp.float32)
    scale = 0.5  # deterministic "parameter" from __init__(scale)

    y = spect_scaling(x, scale)
    y = jax.block_until_ready(y)

    # correctness check against the trivial reference
    ref = x * scale
    assert y.shape == x.shape and y.dtype == x.dtype
    assert jnp.allclose(y, ref, atol=1e-6, rtol=1e-6)
    print("KERNEL_OK")
</pallas_src>

<mosaic_0001>
module attributes {stable_mosaic.version = 11 : i64} {
  func.func @_scale_kernel(%arg0: i32, %arg1: memref<16x128xf32, #tpu.memory_space<vmem>>, %arg2: memref<16x128xf32, #tpu.memory_space<vmem>>) attributes {dimension_semantics = [#tpu.dimension_semantics<parallel>], iteration_bounds = array<i64: 1>, scalar_prefetch = 0 : i64, scratch_operands = 0 : i64, tpu.core_type = #tpu.core_type<tc>, window_params = [{transform_indices = @transform_0, window_bounds = array<i64: 16, 128>}, {transform_indices = @transform_1, window_bounds = array<i64: 16, 128>}]} {
    %c0 = arith.constant 0 : index
    %c0_0 = arith.constant 0 : index
    %0 = vector.load %arg1[%c0, %c0_0] : memref<16x128xf32, #tpu.memory_space<vmem>>, vector<16x128xf32>
    %cst = arith.constant 5.000000e-01 : f32
    %1 = vector.broadcast %cst : f32 to vector<16x128xf32>
    %2 = arith.mulf %0, %1 : vector<16x128xf32>
    %c0_1 = arith.constant 0 : index
    %c0_2 = arith.constant 0 : index
    %3 = vector.load %arg2[%c0_1, %c0_2] : memref<16x128xf32, #tpu.memory_space<vmem>>, vector<16x128xf32>
    tpu.vector_store %arg2[%c0_1, %c0_2], %2 {strides = array<i32>} : memref<16x128xf32, #tpu.memory_space<vmem>>, vector<16x128xf32>,
    return
  }
  func.func @transform_0(%arg0: i32) -> (i32, i32) {
    %c0_i32 = arith.constant 0 : i32
    %c0_i32_0 = arith.constant 0 : i32
    return %arg0, %c0_i32 : i32, i32
  }
  func.func @transform_1(%arg0: i32) -> (i32, i32) {
    %c0_i32 = arith.constant 0 : i32
    %c0_i32_0 = arith.constant 0 : i32
    return %arg0, %c0_i32 : i32, i32
  }
}

</mosaic_0001>

<llo_original>
// kernel: tpu_custom_call.1
$region0: #{tpu_custom_call.1}
  #allocation0 [shape = 'u32[]', space=smem, size = 0x4, offset = 0x4, fixed_abs, tag = 'smem constant byte address 0x4 - core index']
  #allocation1 [shape = 'u32[72,128]{1,0:T(1,128)}', space=vmem, size = 0x9000, scoped, tag = 'internal scratch']
  %s0 = inlined_call_operand.hbm [shape: f32[16,128], index: 0, kind: input, shape index: {}]
  %s1 = inlined_call_operand.hbm [shape: f32[16,128], index: 1, kind: output, shape index: {}]
  %s2 = sld [smem:[#allocation0]]
  $region18: #{tpu_custom_call.1} parent=0
    _
  %s4 = ssub.s32 1, %s2
  %s5 = scalar_select 0, %s4, %s2
  $region1: #{tpu_custom_call.1} parent=0
    #allocation2 [shape = 'u8[8192]{0}', space=vmem, size = 0x2000, scoped, tag = 'input window, operand 0, single buffered']
    #allocation3 [shape = 's32[1]{0}', space=sflag, size = 0x4, scoped, tag = 'scoped memory for tpu_custom_call.1']
    #allocation4 [shape = 's32[1]{0}', space=sflag, size = 0x4, scoped, tag = 'scoped memory for tpu_custom_call.1']
    #allocation5 [shape = 'u8[8192]{0}', space=vmem, size = 0x2000, scoped, tag = 'output window, operand 0, single buffered']
    %6 = vsyncpa [#allocation3], 0
    %7 = vsyncpa [#allocation4], 0
    // Predicated region
    $region2: #{tpu_custom_call.1} parent=1 // pred_check
      _
    $region3: #{tpu_custom_call.1} parent=1 // pred_check_branch
      %9 = sbr.rel (0) target = $region5
    $region4: #{tpu_custom_call.1} parent=1 // pred_region
      %11 = vsyncadd [#allocation3], 0
      %s12 = sshll.u32 %s0, 4
      %s13 = int_to_ptr.hbm [resolvable:$true] %s12
      %s14 = sshll.u32 [#allocation2], 4
      %s15 = int_to_ptr.vmem [resolvable:$true] %s14
      %20 = dma.hbm_to_vmem [thread:$0]  %s13, 256, %s15, [#allocation3], 128, 128, 8
    $region5: #{tpu_custom_call.1} parent=1 // pred_fallthru
      _
    // Predicated region
    $region6: #{tpu_custom_call.1} parent=1 // pred_check
      _
    $region7: #{tpu_custom_call.1} parent=1 // pred_check_branch
      %22 = sbr.rel (0) target = $region9
    $region8: #{tpu_custom_call.1} parent=1 // pred_region
      %24 = dma.done [#allocation3], 256
    $region9: #{tpu_custom_call.1} parent=1 // pred_fallthru
      _
    %v25 = vld [vmem:[#allocation2] sm:$0xff]
    %v26 = vld [vmem:[#allocation2 + $0x8] sm:$0xff]
    %v27 = vmul.f32 %v25, 0.5
    %v28 = vmul.f32 %v26, 0.5
    %29 = vst [vmem:[#allocation5] sm:$0xff] %v27
    %30 = vst [vmem:[#allocation5 + $0x8] sm:$0xff] %v28
    // Predicated region
    $region10: #{tpu_custom_call.1} parent=1 // pred_check
      _
    $region11: #{tpu_custom_call.1} parent=1 // pred_check_branch
      %32 = sbr.rel (0) target = $region13
    $region12: #{tpu_custom_call.1} parent=1 // pred_region
      %34 = vsyncadd [#allocation4], 0
      %s35 = sshll.u32 [#allocation5], 4
      %s36 = int_to_ptr.vmem [resolvable:$true] %s35
      %s37 = sshll.u32 %s1, 4
      %s38 = int_to_ptr.hbm [resolvable:$true] %s37
      %43 = dma.vmem_to_hbm [thread:$0]  %s36, 256, %s38, [#allocation4], 128, 128, 8
    $region13: #{tpu_custom_call.1} parent=1 // pred_fallthru
      _
    // Predicated region
    $region14: #{tpu_custom_call.1} parent=1 // pred_check
      _
    $region15: #{tpu_custom_call.1} parent=1 // pred_check_branch
      %45 = sbr.rel (0) target = $region17
    $region16: #{tpu_custom_call.1} parent=1 // pred_region
      %47 = dma.done [#allocation4], 256
    $region17: #{tpu_custom_call.1} parent=1 // pred_fallthru
      _
    %48 = vsyncpa [#allocation3], 1
    %49 = vsyncpa [#allocation4], 1

</llo_original>
